<compile_context>
chip_gen: v7x
topology: tpu7x:2x2x1
jax: 0.10.0
libtpu: 0.0.40
codegen_flags: <defaults>
</compile_context>

<pallas_src>
import functools

import jax
import jax.numpy as jnp
from jax.experimental import pallas as pl
from jax.experimental.pallas import tpu as pltpu

# ----------------------------------------------------------------------------
# "Config" constants (playing the role of cfg.audio_params + featurizer params)
# ----------------------------------------------------------------------------
SR = 100                         # cfg.audio_params.sr
WIN_SIZE_S = 2.56                # cfg.audio_params.win_size
HOP_SIZE_S = 1.28                # cfg.audio_params.hop_size
CHUNK_SIZE = int(WIN_SIZE_S * SR)        # 256
CHUNK_STEP = int(HOP_SIZE_S * SR)        # 128
FEAT_WIN_LENGTH = 128            # featurizer win_length
FEAT_HOP_LENGTH = 64             # featurizer hop_length
PAD_CHUNK = FEAT_WIN_LENGTH - CHUNK_SIZE % FEAT_HOP_LENGTH   # 128
WS = CHUNK_SIZE + PAD_CHUNK      # 384   window size per chunk
HS = CHUNK_STEP + PAD_CHUNK      # 256   hop between chunks
OVERLAP = WS - HS                # 128   overlap carried chunk -> next chunk
PADDING_WHOLE = CHUNK_SIZE - CHUNK_STEP  # 128
N_CHANNELS = 2
CHUNKS_PER_STEP = 128            # max B: chunks folded per grid step

# Layout / correctness guards (don't let these become silent lies).
assert HS % 128 == 0, "hop must stay lane-aligned"
assert OVERLAP % 128 == 0 and OVERLAP <= HS, "overlap must stay lane-aligned"
assert WS == HS + OVERLAP
# Needed so the "phantom previous chunk" term of global chunk 0 is computed from
# leading zero-padding only (and is therefore exactly zero).
assert PADDING_WHOLE >= OVERLAP
assert CHUNKS_PER_STEP % 8 == 0, "B must be a multiple of 8 for sublane packing"


def hann_window(n: int) -> jnp.ndarray:
    # torch.hann_window(n) (periodic=True): 0.5 - 0.5*cos(2*pi*k/n)
    k = jnp.arange(n, dtype=jnp.float32)
    return 0.5 - 0.5 * jnp.cos(2.0 * jnp.pi * k / n)


def _round_up(x: int, m: int) -> int:
    return ((x + m - 1) // m) * m


# ----------------------------------------------------------------------------
# Pallas kernel: B chunks per step, vectorized over the sublane (chunk) axis
# ----------------------------------------------------------------------------
def _separate_fold_kernel(main_ref, win_ref, mix_ref, out_ref, *, n_channels: int):
    # main_ref: (C, B, HS)  B consecutive hops of the padded signal (chunk heads)
    # win_ref : (1, WS)     hann synthesis window
    # mix_ref : (C, C)      stand-in separation model, SMEM scalars
    # out_ref : (C, B, HS)  this step's overlap-add output block (written once)
    win_head = win_ref[:, :HS]       # (1, HS)      window over a chunk's first HS samples
    win_tail = win_ref[:, HS:]       # (1, OVERLAP) window over a chunk's trailing OVERLAP

    # Load each channel's (B, HS) tile exactly once: full (8,128) vreg occupancy.
    xs = [main_ref[c] for c in range(n_channels)]

    for o in range(n_channels):
        # TODO(synk): the real checkpoint-loaded TF-domain separation model
        # (featurizer -> net -> inverse_featurizer) is not reproducible here;
        # replaced with a deterministic channel-mixing matrix (SMEM scalar * vector).
        sep = mix_ref[o, 0] * xs[0]
        for c in range(1, n_channels):
            sep = sep + mix_ref[o, c] * xs[c]        # (B, HS)

        # window multiply (Separator.separate when self.window is not None)
        head = sep * win_head                        # each chunk's windowed head, (B, HS)

        # Overlap-add fold: chunk b-1's windowed tail lands on chunk b's first OVERLAP
        # output samples.  Chunk b-1's tail samples ARE main[:, b, :OVERLAP], so with
        # the linear, pointwise-in-time stand-in model the previous chunk's tail is
        # recomputed in-step — no cross-step carry, grid axis can be "parallel"
        # (megacore-shardable on v7x).  Global chunk 0 has no predecessor; its first
        # OVERLAP inputs are the leading zero-pad, so this term is exactly 0 there.
        prev_tail = sep[:, :OVERLAP] * win_tail      # (B, OVERLAP)

        # Two lane-aligned stores (no concatenate-then-store), written exactly once.
        out_ref[o, :, :OVERLAP] = head[:, :OVERLAP] + prev_tail
        out_ref[o, :, OVERLAP:] = head[:, OVERLAP:]


def separator_forward(y: jnp.ndarray, mix: jnp.ndarray,
                      max_chunks_per_step: int = CHUNKS_PER_STEP) -> jnp.ndarray:
    """Separator.forward: pad -> (implicit) unfold -> separate(+window) -> fold -> unpad."""
    n_channels, duration = y.shape

    # --- pad (Separator.pad) ---
    padding_add = HS - (duration + PADDING_WHOLE * 2 - WS) % HS
    dur_padded = duration + 2 * PADDING_WHOLE + padding_add
    n_chunks = (dur_padded - WS) // HS + 1
    assert (n_chunks - 1) * HS + WS == dur_padded

    # Chunks per step: multiple of 8 (sublane packing), balanced across steps, capped
    # at max_chunks_per_step.  Rounding n_chunks up to a multiple of b only adds
    # all-zero chunks whose output lands past the region unpad keeps
    # (PADDING_WHOLE + padding_add > 0 always).
    n_steps_target = pl.cdiv(n_chunks, max_chunks_per_step)
    b = min(max_chunks_per_step,
            _round_up(pl.cdiv(n_chunks, n_steps_target), 8))
    n_steps = pl.cdiv(n_chunks, b)
    n_chunks_padded = n_steps * b

    l_work = n_chunks_padded * HS
    y_work = jnp.pad(
        y.astype(jnp.float32),
        ((0, 0), (PADDING_WHOLE, l_work - duration - PADDING_WHOLE)))
    # Free metadata reshape: chunks go onto the sublane axis, HS samples onto lanes.
    y_main = y_work.reshape(n_channels, n_chunks_padded, HS)

    window = hann_window(WS)[None, :]          # (1, WS)
    mix = mix.astype(jnp.float32)

    kernel = functools.partial(_separate_fold_kernel, n_channels=n_channels)

    out_main = pl.pallas_call(
        kernel,
        out_shape=jax.ShapeDtypeStruct((n_channels, n_chunks_padded, HS),
                                       jnp.float32),
        grid_spec=pltpu.PrefetchScalarGridSpec(
            num_scalar_prefetch=0,
            grid=(n_steps,),
            in_specs=[
                # B chunks of the padded signal, packed on the sublane axis.
                pl.BlockSpec((n_channels, b, HS), lambda j: (0, j, 0)),
                # Synthesis window.
                pl.BlockSpec((1, WS), lambda j: (0, 0)),
                # Stand-in separation model parameters, read as SMEM scalars.
                pl.BlockSpec(memory_space=pltpu.MemorySpace.SMEM),
            ],
            # Lane-dense, write-once output block per step.
            out_specs=pl.BlockSpec((n_channels, b, HS), lambda j: (0, j, 0)),
        ),
        compiler_params=pltpu.CompilerParams(
            # No cross-step carry anymore -> steps are independent (megacore on v7x).
            dimension_semantics=("parallel",),
        ),
    )(y_main, window, mix)

    # --- unpad (Separator.unpad) ---
    out_work = out_main.reshape(n_channels, l_work)
    return out_work[:, PADDING_WHOLE:PADDING_WHOLE + duration]


if __name__ == "__main__":
    key = jax.random.PRNGKey(0)
    k_y, k_m = jax.random.split(key)

    duration = 40000   # ~156 chunks -> 2 grid steps with B=80
    y = jax.random.normal(k_y, (N_CHANNELS, duration), dtype=jnp.float32)

    # deterministic stand-in "separation model" parameters (channel mixing)
    mix = (jnp.eye(N_CHANNELS, dtype=jnp.float32)
           + 0.1 * jax.random.normal(k_m, (N_CHANNELS, N_CHANNELS), dtype=jnp.float32))

    out = jax.block_until_ready(separator_forward(y, mix))
    assert out.shape == (N_CHANNELS, duration), out.shape

    # pure-JAX reference of the same pipeline (pad/unfold/mix*window/fold/unpad)
    padding_add = HS - (duration + PADDING_WHOLE * 2 - WS) % HS
    y_p = jnp.pad(y, ((0, 0), (PADDING_WHOLE, PADDING_WHOLE + padding_add)))
    dur_padded = y_p.shape[-1]
    n_chunks = (dur_padded - WS) // HS + 1
    idx = jnp.arange(n_chunks)[:, None] * HS + jnp.arange(WS)[None, :]
    chunks = y_p[:, idx]                                   # (C, n_chunks, WS)
    win = hann_window(WS)
    sep = jnp.einsum("oc,cnw->onw", mix, chunks) * win[None, None, :]
    ref = jnp.zeros((N_CHANNELS, dur_padded), jnp.float32)
    ref = ref.at[:, idx].add(sep)                          # overlap-add fold
    ref = ref[:, PADDING_WHOLE:dur_padded - (PADDING_WHOLE + padding_add)]

    err = float(jnp.max(jnp.abs(out - ref)))
    assert jnp.allclose(out, ref, atol=1e-4, rtol=1e-4), err

    print("KERNEL_OK")
</pallas_src>

<mosaic_0001>
module attributes {stable_mosaic.version = 11 : i64} {
  func.func @_separate_fold_kernel(%arg0: i32, %arg1: memref<2x80x256xf32, #tpu.memory_space<vmem>>, %arg2: memref<1x384xf32, #tpu.memory_space<vmem>>, %arg3: memref<2x2xf32, #tpu.memory_space<smem>>, %arg4: memref<2x80x256xf32, #tpu.memory_space<vmem>>) attributes {dimension_semantics = [#tpu.dimension_semantics<parallel>], iteration_bounds = array<i64: 2>, scalar_prefetch = 0 : i64, scratch_operands = 0 : i64, tpu.core_type = #tpu.core_type<tc>, window_params = [{transform_indices = @transform_0, window_bounds = array<i64: 2, 80, 256>}, {pipeline_mode = #tpu.pipeline_mode<synchronous>, transform_indices = @transform_1, window_bounds = array<i64: 1, 384>}, {transform_indices = @transform_2, window_bounds = array<i64: 2, 2>}, {transform_indices = @transform_3, window_bounds = array<i64: 2, 80, 256>}]} {
    %c0 = arith.constant 0 : index
    %c0_0 = arith.constant 0 : index
    %0 = vector.load %arg2[%c0, %c0_0] : memref<1x384xf32, #tpu.memory_space<vmem>>, vector<1x256xf32>
    %c0_1 = arith.constant 0 : index
    %c256 = arith.constant 256 : index
    %1 = vector.load %arg2[%c0_1, %c256] : memref<1x384xf32, #tpu.memory_space<vmem>>, vector<1x128xf32>
    %c0_2 = arith.constant 0 : index
    %c0_3 = arith.constant 0 : index
    %c0_4 = arith.constant 0 : index
    %2 = vector.load %arg1[%c0_2, %c0_3, %c0_4] : memref<2x80x256xf32, #tpu.memory_space<vmem>>, vector<1x80x256xf32>
    %3 = vector.shape_cast %2 : vector<1x80x256xf32> to vector<80x256xf32>
    %c1 = arith.constant 1 : index
    %c0_5 = arith.constant 0 : index
    %c0_6 = arith.constant 0 : index
    %4 = vector.load %arg1[%c1, %c0_5, %c0_6] : memref<2x80x256xf32, #tpu.memory_space<vmem>>, vector<1x80x256xf32>
    %5 = vector.shape_cast %4 : vector<1x80x256xf32> to vector<80x256xf32>
    %c0_7 = arith.constant 0 : index
    %c0_8 = arith.constant 0 : index
    %6 = memref.load %arg3[%c0_7, %c0_8] : memref<2x2xf32, #tpu.memory_space<smem>>
    %7 = vector.broadcast %6 : f32 to vector<80x256xf32>
    %8 = arith.mulf %7, %3 : vector<80x256xf32>
    %c0_9 = arith.constant 0 : index
    %c1_10 = arith.constant 1 : index
    %9 = memref.load %arg3[%c0_9, %c1_10] : memref<2x2xf32, #tpu.memory_space<smem>>
    %10 = vector.broadcast %9 : f32 to vector<80x256xf32>
    %11 = arith.mulf %10, %5 : vector<80x256xf32>
    %12 = arith.addf %8, %11 : vector<80x256xf32>
    %13 = vector.broadcast %0 : vector<1x256xf32> to vector<80x256xf32>
    %14 = arith.mulf %12, %13 : vector<80x256xf32>
    %15 = vector.extract_strided_slice %12 {offsets = [0, 0], sizes = [80, 128], strides = [1, 1]} : vector<80x256xf32> to vector<80x128xf32>
    %16 = vector.broadcast %1 : vector<1x128xf32> to vector<80x128xf32>
    %17 = arith.mulf %15, %16 : vector<80x128xf32>
    %18 = vector.extract_strided_slice %14 {offsets = [0, 0], sizes = [80, 128], strides = [1, 1]} : vector<80x256xf32> to vector<80x128xf32>
    %19 = arith.addf %18, %17 : vector<80x128xf32>
    %c0_11 = arith.constant 0 : index
    %c0_12 = arith.constant 0 : index
    %c0_13 = arith.constant 0 : index
    %20 = vector.load %arg4[%c0_11, %c0_12, %c0_13] : memref<2x80x256xf32, #tpu.memory_space<vmem>>, vector<1x80x128xf32>
    %21 = vector.shape_cast %20 : vector<1x80x128xf32> to vector<80x128xf32>
    %22 = vector.shape_cast %19 : vector<80x128xf32> to vector<1x80x128xf32>
    tpu.vector_store %arg4[%c0_11, %c0_12, %c0_13], %22 {strides = array<i32>} : memref<2x80x256xf32, #tpu.memory_space<vmem>>, vector<1x80x128xf32>,
    %23 = vector.extract_strided_slice %14 {offsets = [0, 128], sizes = [80, 128], strides = [1, 1]} : vector<80x256xf32> to vector<80x128xf32>
    %c0_14 = arith.constant 0 : index
    %c0_15 = arith.constant 0 : index
    %c128 = arith.constant 128 : index
    %24 = vector.load %arg4[%c0_14, %c0_15, %c128] : memref<2x80x256xf32, #tpu.memory_space<vmem>>, vector<1x80x128xf32>
    %25 = vector.shape_cast %24 : vector<1x80x128xf32> to vector<80x128xf32>
    %26 = vector.shape_cast %23 : vector<80x128xf32> to vector<1x80x128xf32>
    tpu.vector_store %arg4[%c0_14, %c0_15, %c128], %26 {strides = array<i32>} : memref<2x80x256xf32, #tpu.memory_space<vmem>>, vector<1x80x128xf32>,
    %c1_16 = arith.constant 1 : index
    %c0_17 = arith.constant 0 : index
    %27 = memref.load %arg3[%c1_16, %c0_17] : memref<2x2xf32, #tpu.memory_space<smem>>
    %28 = vector.broadcast %27 : f32 to vector<80x256xf32>
    %29 = arith.mulf %28, %3 : vector<80x256xf32>
    %c1_18 = arith.constant 1 : index
    %c1_19 = arith.constant 1 : index
    %30 = memref.load %arg3[%c1_18, %c1_19] : memref<2x2xf32, #tpu.memory_space<smem>>
    %31 = vector.broadcast %30 : f32 to vector<80x256xf32>
    %32 = arith.mulf %31, %5 : vector<80x256xf32>
    %33 = arith.addf %29, %32 : vector<80x256xf32>
    %34 = vector.broadcast %0 : vector<1x256xf32> to vector<80x256xf32>
    %35 = arith.mulf %33, %34 : vector<80x256xf32>
    %36 = vector.extract_strided_slice %33 {offsets = [0, 0], sizes = [80, 128], strides = [1, 1]} : vector<80x256xf32> to vector<80x128xf32>
    %37 = vector.broadcast %1 : vector<1x128xf32> to vector<80x128xf32>
    %38 = arith.mulf %36, %37 : vector<80x128xf32>
    %39 = vector.extract_strided_slice %35 {offsets = [0, 0], sizes = [80, 128], strides = [1, 1]} : vector<80x256xf32> to vector<80x128xf32>
    %40 = arith.addf %39, %38 : vector<80x128xf32>
    %c1_20 = arith.constant 1 : index
    %c0_21 = arith.constant 0 : index
    %c0_22 = arith.constant 0 : index
    %41 = vector.load %arg4[%c1_20, %c0_21, %c0_22] : memref<2x80x256xf32, #tpu.memory_space<vmem>>, vector<1x80x128xf32>
    %42 = vector.shape_cast %41 : vector<1x80x128xf32> to vector<80x128xf32>
    %43 = vector.shape_cast %40 : vector<80x128xf32> to vector<1x80x128xf32>
    tpu.vector_store %arg4[%c1_20, %c0_21, %c0_22], %43 {strides = array<i32>} : memref<2x80x256xf32, #tpu.memory_space<vmem>>, vector<1x80x128xf32>,
    %44 = vector.extract_strided_slice %35 {offsets = [0, 128], sizes = [80, 128], strides = [1, 1]} : vector<80x256xf32> to vector<80x128xf32>
    %c1_23 = arith.constant 1 : index
    %c0_24 = arith.constant 0 : index
    %c128_25 = arith.constant 128 : index
    %45 = vector.load %arg4[%c1_23, %c0_24, %c128_25] : memref<2x80x256xf32, #tpu.memory_space<vmem>>, vector<1x80x128xf32>
    %46 = vector.shape_cast %45 : vector<1x80x128xf32> to vector<80x128xf32>
    %47 = vector.shape_cast %44 : vector<80x128xf32> to vector<1x80x128xf32>
    tpu.vector_store %arg4[%c1_23, %c0_24, %c128_25], %47 {strides = array<i32>} : memref<2x80x256xf32, #tpu.memory_space<vmem>>, vector<1x80x128xf32>,
    return
  }
  func.func @transform_0(%arg0: i32) -> (i32, i32, i32) {
    %c0_i32 = arith.constant 0 : i32
    %c0_i32_0 = arith.constant 0 : i32
    %c0_i32_1 = arith.constant 0 : i32
    return %c0_i32, %arg0, %c0_i32_0 : i32, i32, i32
  }
  func.func @transform_1(%arg0: i32) -> (i32, i32) {
    %c0_i32 = arith.constant 0 : i32
    %c0_i32_0 = arith.constant 0 : i32
    %c0_i32_1 = arith.constant 0 : i32
    return %c0_i32, %c0_i32_0 : i32, i32
  }
  func.func @transform_2(%arg0: i32) -> (i32, i32) {
    %c0_i32 = arith.constant 0 : i32
    %c0_i32_0 = arith.constant 0 : i32
    %c0_i32_1 = arith.constant 0 : i32
    return %c0_i32, %c0_i32_0 : i32, i32
  }
  func.func @transform_3(%arg0: i32) -> (i32, i32, i32) {
    %c0_i32 = arith.constant 0 : i32
    %c0_i32_0 = arith.constant 0 : i32
    %c0_i32_1 = arith.constant 0 : i32
    return %c0_i32, %arg0, %c0_i32_0 : i32, i32, i32
  }
}

</mosaic_0001>

<llo_original>
// kernel: tpu_custom_call.1
$region0: #{tpu_custom_call.1}
  #allocation0 [shape = 'u32[]', space=smem, size = 0x4, offset = 0x4, fixed_abs, tag = 'smem constant byte address 0x4 - core index']
  #allocation1 [shape = 'u32[144,128]{1,0:T(1,128)}', space=vmem, size = 0x12000, scoped, tag = 'internal scratch']
  #allocation8 [shape = 's32[]', space=sflag, size = 0x4, offset = 0, fixed_abs, tag = 'sflag constant byte address 0x0 - dummy sync flag']
  #allocation10 [shape = 's32[]', space=sflag, size = 0x4, offset = 0, fixed_abs, tag = 'sflag constant byte address 0x0 - dummy sync flag']
  %s0 = inlined_call_operand.hbm [shape: f32[2,160,256], index: 0, kind: input, shape index: {}]
  %s1 = inlined_call_operand.vmem [shape: f32[1,384], index: 1, kind: input, shape index: {}]
  %s2 = inlined_call_operand.vmem [shape: f32[2,2], index: 2, kind: input, shape index: {}]
  %s3 = inlined_call_operand.hbm [shape: f32[2,160,256], index: 3, kind: output, shape index: {}]
  %s4 = sld [smem:[#allocation0]]
  $region53: #{tpu_custom_call.1} parent=0
    _
  %s6 = ssub.s32 1, %s4
  %s7 = scalar_select 0, %s6, %s4
  $region1: #{tpu_custom_call.1} parent=0
    #allocation2 [shape = 'u8[327680]{0}', space=vmem, size = 0x50000, scoped, tag = 'input window, operand 0']
    #allocation3 [shape = 's32[2]{0}', space=sflag, size = 0x8, scoped, tag = 'scoped memory for tpu_custom_call.1']
    #allocation4 [shape = 's32[2]{0}', space=sflag, size = 0x8, scoped, tag = 'scoped memory for tpu_custom_call.1']
    #allocation5 [shape = 's32[2]{0}', space=sflag, size = 0x8, scoped, tag = 'scoped memory for tpu_custom_call.1']
    #allocation6 [shape = 'u8[1024]{0}', space=smem, size = 0x400, scoped, tag = 'input window, operand 2, single buffered']
    #allocation7 [shape = 'u8[327680]{0}', space=vmem, size = 0x50000, scoped, tag = 'output window, operand 0']
    %8 = vsyncpa [#allocation3], 0
    %s9 = scalar_lea.sflag [#allocation3], 1
    %10 = vsyncpa %s9, 0
    %11 = vsyncpa [#allocation5], 0
    %12 = vsyncpa [#allocation4], 0
    %s13 = scalar_lea.sflag [#allocation4], 1
    %14 = vsyncpa %s13, 0
    loop: start=0, step=1, limit=4
    $region2: #{tpu_custom_call.1} parent=1 // loop_pre_header
      _
    $region3: #{tpu_custom_call.1} parent=1 // loop_header
      %s16 = sphi 0, %s20
      %p17 = scmp.ge.s32.totalorder %s16, 4
      %s26 = sphi 0, %s28
      %s29 = sphi 0, %s26
      %s30 = sphi 0, %s29
      %s46 = sphi 0, %s30
      %s50 = sphi 0, %s50
      %s52 = sphi 0, %s50
      %s53 = sphi 0, %s52
      %s67 = sphi 0, %s53
      %s71 = sphi 0, %s71
      %s73 = sphi 0, %s71
      %s74 = sphi 0, %s73
      %s88 = sphi 0, %s74
      %s94 = sphi 0, %s96
      %s97 = sphi 0, %s94
      %s98 = sphi 0, %s97
      %s114 = sphi 0, %s98
    $region4: #{tpu_custom_call.1} parent=1 // loop_header_branch
      %19 = sbr.rel (%p17) target = $region8
    $region5: #{tpu_custom_call.1} parent=1 // loop_body
      %s21 = ssub.s32 %s16, 1
      %s22 = ssub.s32 %s16, 2
      %s23 = sadd.s32 %s16, 1
      %s24 = ssub.s32 %s16, %s23
      %p25 = scmp.eq.s32.totalorder %s24, 0
      %s27 = sadd.s32 %s26, 1
      %s28 = scalar_select %p25, %s26, %s27
      %p31 = pneg %p25
      %p32 = scmp.eq.s32.totalorder %s16, 1
      %p33 = por %p31, %p32
      %p34 = scmp.ne.s32.totalorder %s26, %s29
      %p35 = scmp.eq.s32.totalorder %s16, 0
      %p36 = por %p34, %p35
      %p37 = scmp.ne.s32.totalorder %s26, %s29
      %p38 = scmp.eq.s32.totalorder %s21, 1
      %p39 = por %p37, %p38
      %p40 = scmp.ne.s32.totalorder %s29, %s30
      %p41 = scmp.eq.s32.totalorder %s21, 0
      %p42 = por %p40, %p41
      %p43 = scmp.ne.s32.totalorder %s29, %s30
      %p44 = scmp.eq.s32.totalorder %s22, 1
      %p45 = por %p43, %p44
      %p47 = scmp.ne.s32.totalorder %s30, %s46
      %p48 = scmp.eq.s32.totalorder %s22, 0
      %p49 = por %p47, %p48
      %s51 = sadd.s32 %s50, 1
      %p54 = scmp.eq.s32.totalorder %s16, 1
      %p55 = scmp.ne.s32.totalorder %s50, %s52
      %p56 = scmp.eq.s32.totalorder %s16, 0
      %p57 = por %p55, %p56
      %p58 = scmp.ne.s32.totalorder %s50, %s52
      %p59 = scmp.eq.s32.totalorder %s21, 1
      %p60 = por %p58, %p59
      %p61 = scmp.ne.s32.totalorder %s52, %s53
      %p62 = scmp.eq.s32.totalorder %s21, 0
      %p63 = por %p61, %p62
      %p64 = scmp.ne.s32.totalorder %s52, %s53
      %p65 = scmp.eq.s32.totalorder %s22, 1
      %p66 = por %p64, %p65
      %p68 = scmp.ne.s32.totalorder %s53, %s67
      %p69 = scmp.eq.s32.totalorder %s22, 0
      %p70 = por %p68, %p69
      %s72 = sadd.s32 %s71, 1
      %p75 = scmp.eq.s32.totalorder %s16, 1
      %p76 = scmp.ne.s32.totalorder %s71, %s73
      %p77 = scmp.eq.s32.totalorder %s16, 0
      %p78 = por %p76, %p77
      %p79 = scmp.ne.s32.totalorder %s71, %s73
      %p80 = scmp.eq.s32.totalorder %s21, 1
      %p81 = por %p79, %p80
      %p82 = scmp.ne.s32.totalorder %s73, %s74
      %p83 = scmp.eq.s32.totalorder %s21, 0
      %p84 = por %p82, %p83
      %p85 = scmp.ne.s32.totalorder %s73, %s74
      %p86 = scmp.eq.s32.totalorder %s22, 1
      %p87 = por %p85, %p86
      %p89 = scmp.ne.s32.totalorder %s74, %s88
      %p90 = scmp.eq.s32.totalorder %s22, 0
      %p91 = por %p89, %p90
      %s92 = ssub.s32 %s16, %s23
      %p93 = scmp.eq.s32.totalorder %s92, 0
      %s95 = sadd.s32 %s94, 1
      %s96 = scalar_select %p93, %s94, %s95
      %p99 = pneg %p93
      %p100 = scmp.eq.s32.totalorder %s16, 1
      %p101 = por %p99, %p100
      %p102 = scmp.ne.s32.totalorder %s94, %s97
      %p103 = scmp.eq.s32.totalorder %s16, 0
      %p104 = por %p102, %p103
      %p105 = scmp.ne.s32.totalorder %s94, %s97
      %p106 = scmp.eq.s32.totalorder %s21, 1
      %p107 = por %p105, %p106
      %p108 = scmp.ne.s32.totalorder %s97, %s98
      %p109 = scmp.eq.s32.totalorder %s21, 0
      %p110 = por %p108, %p109
      %p111 = scmp.ne.s32.totalorder %s97, %s98
      %p112 = scmp.eq.s32.totalorder %s22, 1
      %p113 = por %p111, %p112
      %p115 = scmp.ne.s32.totalorder %s98, %s114
      %p116 = scmp.eq.s32.totalorder %s22, 0
      %p117 = por %p115, %p116
      %p118 = scmp.le.s32.totalorder 1, %s16
      %p119 = scmp.lt.s32.totalorder %s16, 3
      %p120 = pnand %p118, %p119
      %p121 = pneg %p120
      // Predicated region
      $region9: #{tpu_custom_call.1} parent=5 // pred_check
        _
      $region10: #{tpu_custom_call.1} parent=5 // pred_check_branch
        %123 = sbr.rel (%p120) target = $region12
      $region11: #{tpu_custom_call.1} parent=5 // pred_region
        %s124 = ssub.s32 %s16, 1
        // Predicated region
        $region13: #{tpu_custom_call.1} parent=11 // pred_check
          %p125 = pneg %p63
        $region14: #{tpu_custom_call.1} parent=11 // pred_check_branch
          %127 = sbr.rel (%p125) target = $region16
        $region15: #{tpu_custom_call.1} parent=11 // pred_region
          _
        $region16: #{tpu_custom_call.1} parent=11 // pred_fallthru
          _
        // Predicated region
        $region17: #{tpu_custom_call.1} parent=11 // pred_check
          %p128 = pneg %p84
        $region18: #{tpu_custom_call.1} parent=11 // pred_check_branch
          %130 = sbr.rel (%p128) target = $region20
        $region19: #{tpu_custom_call.1} parent=11 // pred_region
          %s132 = ssub.s32 32, 32
          %133 = vsyncadd [#allocation5], %s132
          %s135 = sshll.u32 %s2, 4
          %s136 = int_to_ptr.vmem [resolvable:$true] %s135
          %138 = dma.vmem_to_smem %s136, 32, [#allocation6], [#allocation5]
        $region20: #{tpu_custom_call.1} parent=11 // pred_fallthru
          _
      $region12: #{tpu_custom_call.1} parent=5 // pred_fallthru
        _
      %p139 = scmp.lt.s32.totalorder %s16, 2
      // Predicated region
      $region21: #{tpu_custom_call.1} parent=5 // pred_check
        %p140 = pneg %p139
      $region22: #{tpu_custom_call.1} parent=5 // pred_check_branch
        %142 = sbr.rel (%p140) target = $region24
      $region23: #{tpu_custom_call.1} parent=5 // pred_region
        // Predicated region
        $region25: #{tpu_custom_call.1} parent=23 // pred_check
          %p143 = pneg %p36
        $region26: #{tpu_custom_call.1} parent=23 // pred_check_branch
          %145 = sbr.rel (%p143) target = $region28
        $region27: #{tpu_custom_call.1} parent=23 // pred_region
          #allocation9 [shape = 'u32[6]{0}', space=smem, size = 0x18, scoped, tag = 'DMA stride descriptor']
          %s146 = sand.u32 %s26, 1
          %s147 = scalar_lea.sflag [#allocation3], %s146
          %s148 = sand.u32 %s26, 1
          %s149 = smul.addr %s148, 320
          %s150 = scalar_lea.vmem [#allocation2], %s149
          %s151 = smul.u32 10, %s16
          %s153 = ssub.s32 5120, 5120
          %154 = vsyncadd %s147, %s153
          %s155 = smul.addr %s151, 2
          %s156 = smul.addr %s155, 128
          %s157 = scalar_lea.hbm %s0, %s156
          %s159 = sshll.u32 1, 14
          %s160 = sxor.u32 4294967295, %s159
          %s162 = sld [smem:[#allocation0]]
          %s163 = sadd.s32 2, %s162
          %s165 = sshll.u32 7, 26
          %s166 = sxor.u32 4294967295, %s165
          %s167 = sand.u32 0, %s166
          %s168 = sshll.u32 %s163, 26
          %s169 = sor.u32 %s167, %s168
          %s170 = sshll.u32 %s150, 4
          %s171 = int_to_ptr.vmem [resolvable:$true] %s170
          %177 = sst [smem:[#allocation9]] 5120
          %s178 = scalar_lea.smem [#allocation9], 1
          %179 = sst [smem:[%s178]] 2560
          %s180 = scalar_lea.smem [#allocation9], 2
          %181 = sst [smem:[%s180]] 10
          %s182 = scalar_lea.smem [#allocation9], 3
          %183 = sst [smem:[%s182]] 256
          %s184 = scalar_lea.smem [#allocation9], 4
          %185 = sst [smem:[%s184]] 256
          %s186 = scalar_lea.smem [#allocation9], 5
          %187 = sst [smem:[%s186]] 16
          %189 = dma.general %s157, 5120, %s171, %s147, [#allocation8], [#allocation9], %s169, 0
        $region28: #{tpu_custom_call.1} parent=23 // pred_fallthru
          _
      $region24: #{tpu_custom_call.1} parent=5 // pred_fallthru
        _
      %p190 = scmp.le.s32.totalorder 1, %s16
      %p191 = scmp.lt.s32.totalorder %s16, 3
      %p192 = pnand %p190, %p191
      %p193 = pneg %p192
      // Predicated region
      $region29: #{tpu_custom_call.1} parent=5 // pred_check
        _
      $region30: #{tpu_custom_call.1} parent=5 // pred_check_branch
        %195 = sbr.rel (%p192) target = $region32
      $region31: #{tpu_custom_call.1} parent=5 // pred_region
        %s196 = ssub.s32 %s16, 1
        %s197 = sand.u32 %s29, 1
        %s198 = scalar_lea.sflag [#allocation3], %s197
        %s199 = sand.u32 %s29, 1
        %s200 = smul.addr %s199, 320
        %s201 = scalar_lea.vmem [#allocation2], %s200
        // Predicated region
        $region33: #{tpu_custom_call.1} parent=31 // pred_check
          %p202 = pneg %p42
        $region34: #{tpu_custom_call.1} parent=31 // pred_check_branch
          %204 = sbr.rel (%p202) target = $region36
        $region35: #{tpu_custom_call.1} parent=31 // pred_region
          %205 = dma.done %s198, 5120
        $region36: #{tpu_custom_call.1} parent=31 // pred_fallthru
          _
        // Predicated region
        $region37: #{tpu_custom_call.1} parent=31 // pred_check
          %p206 = pneg %p84
        $region38: #{tpu_custom_call.1} parent=31 // pred_check_branch
          %208 = sbr.rel (%p206) target = $region40
        $region39: #{tpu_custom_call.1} parent=31 // pred_region
          %209 = dma.done [#allocation5], 32
        $region40: #{tpu_custom_call.1} parent=31 // pred_fallthru
          _
        %210 = sfence
        %s211 = sand.u32 %s29, 1
        %s212 = scalar_lea.sflag [#allocation3], %s211
        %s213 = sand.u32 %s29, 1
        %s214 = smul.addr %s213, 320
        %s215 = scalar_lea.vmem [#allocation2], %s214
        %p216 = pneg %p42
        %p217 = pneg %p39
        %p218 = pneg %p63
        %p219 = pneg %p60
        %p220 = pneg %p84
        %p221 = pneg %p81
        %p222 = pneg %p110
        %p223 = pneg %p107
        %s224 = sand.u32 %s97, 1
        %s225 = scalar_lea.sflag [#allocation4], %s224
        %s226 = sand.u32 %s97, 1
        %s227 = smul.addr %s226, 320
        %s228 = scalar_lea.vmem [#allocation7], %s227
        %s229 = smul.u32 10, %s21
        %s230 = smul.u32 10, %s21
        %v231 = vld [vmem:[%s1] sm:$0x3]
        %v232 = vld [vmem:[%s1 + $0x2] sm:$0x1]
        %v233 = vld [vmem:[%s201] sm:$0xff]
        %v234 = vld [vmem:[%s201 + $0x8] sm:$0xff]
        %v235 = vld [vmem:[%s201 + $0x10] sm:$0xff]
        %v236 = vld [vmem:[%s201 + $0x18] sm:$0xff]
        %v237 = vld [vmem:[%s201 + $0x20] sm:$0xff]
        %v238 = vld [vmem:[%s201 + $0x28] sm:$0xff]
        %v239 = vld [vmem:[%s201 + $0x30] sm:$0xff]
        %v240 = vld [vmem:[%s201 + $0x38] sm:$0xff]
        %v241 = vld [vmem:[%s201 + $0x40] sm:$0xff]
        %v242 = vld [vmem:[%s201 + $0x48] sm:$0xff]
        %v243 = vld [vmem:[%s201 + $0x50] sm:$0xff]
        %v244 = vld [vmem:[%s201 + $0x58] sm:$0xff]
        %v245 = vld [vmem:[%s201 + $0x60] sm:$0xff]
        %v246 = vld [vmem:[%s201 + $0x68] sm:$0xff]
        %v247 = vld [vmem:[%s201 + $0x70] sm:$0xff]
        %v248 = vld [vmem:[%s201 + $0x78] sm:$0xff]
        %v249 = vld [vmem:[%s201 + $0x80] sm:$0xff]
        %v250 = vld [vmem:[%s201 + $0x88] sm:$0xff]
        %v251 = vld [vmem:[%s201 + $0x90] sm:$0xff]
        %v252 = vld [vmem:[%s201 + $0x98] sm:$0xff]
        %s253 = scalar_lea.vmem %s201, 160 [#allocation2]
        %v254 = vld [vmem:[%s253] sm:$0xff]
        %v255 = vld [vmem:[%s253 + $0x8] sm:$0xff]
        %v256 = vld [vmem:[%s253 + $0x10] sm:$0xff]
        %v257 = vld [vmem:[%s253 + $0x18] sm:$0xff]
        %v258 = vld [vmem:[%s253 + $0x20] sm:$0xff]
        %v259 = vld [vmem:[%s253 + $0x28] sm:$0xff]
        %v260 = vld [vmem:[%s253 + $0x30] sm:$0xff]
        %v261 = vld [vmem:[%s253 + $0x38] sm:$0xff]
        %v262 = vld [vmem:[%s253 + $0x40] sm:$0xff]
        %v263 = vld [vmem:[%s253 + $0x48] sm:$0xff]
        %v264 = vld [vmem:[%s253 + $0x50] sm:$0xff]
        %v265 = vld [vmem:[%s253 + $0x58] sm:$0xff]
        %v266 = vld [vmem:[%s253 + $0x60] sm:$0xff]
        %v267 = vld [vmem:[%s253 + $0x68] sm:$0xff]
        %v268 = vld [vmem:[%s253 + $0x70] sm:$0xff]
        %v269 = vld [vmem:[%s253 + $0x78] sm:$0xff]
        %v270 = vld [vmem:[%s253 + $0x80] sm:$0xff]
        %v271 = vld [vmem:[%s253 + $0x88] sm:$0xff]
        %v272 = vld [vmem:[%s253 + $0x90] sm:$0xff]
        %v273 = vld [vmem:[%s253 + $0x98] sm:$0xff]
        %s274 = sld [smem:[#allocation6]]
        %v275 = vstv %s274
        %v276 = vmul.f32 %v275, %v233
        %v277 = vmul.f32 %v275, %v234
        %v278 = vmul.f32 %v275, %v235
        %v279 = vmul.f32 %v275, %v236
        %v280 = vmul.f32 %v275, %v237
        %v281 = vmul.f32 %v275, %v238
        %v282 = vmul.f32 %v275, %v239
        %v283 = vmul.f32 %v275, %v240
        %v284 = vmul.f32 %v275, %v241
        %v285 = vmul.f32 %v275, %v242
        %v286 = vmul.f32 %v275, %v243
        %v287 = vmul.f32 %v275, %v244
        %v288 = vmul.f32 %v275, %v245
        %v289 = vmul.f32 %v275, %v246
        %v290 = vmul.f32 %v275, %v247
        %v291 = vmul.f32 %v275, %v248
        %v292 = vmul.f32 %v275, %v249
        %v293 = vmul.f32 %v275, %v250
        %v294 = vmul.f32 %v275, %v251
        %v295 = vmul.f32 %v275, %v252
        %s296 = sld [smem:[#allocation6 + $0x1]]
        %v297 = vstv %s296
        %v298 = vmul.f32 %v297, %v254
        %v299 = vmul.f32 %v297, %v255
        %v300 = vmul.f32 %v297, %v256
        %v301 = vmul.f32 %v297, %v257
        %v302 = vmul.f32 %v297, %v258
        %v303 = vmul.f32 %v297, %v259
        %v304 = vmul.f32 %v297, %v260
        %v305 = vmul.f32 %v297, %v261
        %v306 = vmul.f32 %v297, %v262
        %v307 = vmul.f32 %v297, %v263
        %v308 = vmul.f32 %v297, %v264
        %v309 = vmul.f32 %v297, %v265
        %v310 = vmul.f32 %v297, %v266
        %v311 = vmul.f32 %v297, %v267
        %v312 = vmul.f32 %v297, %v268
        %v313 = vmul.f32 %v297, %v269
        %v314 = vmul.f32 %v297, %v270
        %v315 = vmul.f32 %v297, %v271
        %v316 = vmul.f32 %v297, %v272
        %v317 = vmul.f32 %v297, %v273
        %v318 = vadd.f32 %v276, %v298
        %v319 = vadd.f32 %v277, %v299
        %v320 = vadd.f32 %v278, %v300
        %v321 = vadd.f32 %v279, %v301
        %v322 = vadd.f32 %v280, %v302
        %v323 = vadd.f32 %v281, %v303
        %v324 = vadd.f32 %v282, %v304
        %v325 = vadd.f32 %v283, %v305
        %v326 = vadd.f32 %v284, %v306
        %v327 = vadd.f32 %v285, %v307
        %v328 = vadd.f32 %v286, %v308
        %v329 = vadd.f32 %v287, %v309
        %v330 = vadd.f32 %v288, %v310
        %v331 = vadd.f32 %v289, %v311
        %v332 = vadd.f32 %v290, %v312
        %v333 = vadd.f32 %v291, %v313
        %v334 = vadd.f32 %v292, %v314
        %v335 = vadd.f32 %v293, %v315
        %v336 = vadd.f32 %v294, %v316
        %v337 = vadd.f32 %v295, %v317
        %v339 = vlaneseq
        %v340 = vshrl.u32 %v339, 7
        %v341 = vsub.s32 0, %v340
        %v342 = vrot.slane %v231, %v341
        %v343 = vlaneseq
        %v344 = vshrl.u32 %v343, 7
        %v345 = vsub.s32 1, %v344
        %v346 = vrot.slane %v231, %v345
        %v349 = vmul.f32 %v318, %v342
        %v350 = vmul.f32 %v319, %v346
        %v351 = vmul.f32 %v320, %v342
        %v352 = vmul.f32 %v321, %v346
        %v353 = vmul.f32 %v322, %v342
        %v354 = vmul.f32 %v323, %v346
        %v355 = vmul.f32 %v324, %v342
        %v356 = vmul.f32 %v325, %v346
        %v357 = vmul.f32 %v326, %v342
        %v358 = vmul.f32 %v327, %v346
        %v359 = vmul.f32 %v328, %v342
        %v360 = vmul.f32 %v329, %v346
        %v361 = vmul.f32 %v330, %v342
        %v362 = vmul.f32 %v331, %v346
        %v363 = vmul.f32 %v332, %v342
        %v364 = vmul.f32 %v333, %v346
        %v365 = vmul.f32 %v334, %v342
        %v366 = vmul.f32 %v335, %v346
        %v367 = vmul.f32 %v336, %v342
        %v368 = vmul.f32 %v337, %v346
        %v370 = vlaneseq
        %v371 = vshrl.u32 %v370, 7
        %v372 = vsub.s32 0, %v371
        %v373 = vrot.slane %v232, %v372
        %v375 = vmul.f32 %v318, %v373
        %v376 = vmul.f32 %v320, %v373
        %v377 = vmul.f32 %v322, %v373
        %v378 = vmul.f32 %v324, %v373
        %v379 = vmul.f32 %v326, %v373
        %v380 = vmul.f32 %v328, %v373
        %v381 = vmul.f32 %v330, %v373
        %v382 = vmul.f32 %v332, %v373
        %v383 = vmul.f32 %v334, %v373
        %v384 = vmul.f32 %v336, %v373
        %v385 = vadd.f32 %v349, %v375
        %v386 = vadd.f32 %v351, %v376
        %v387 = vadd.f32 %v353, %v377
        %v388 = vadd.f32 %v355, %v378
        %v389 = vadd.f32 %v357, %v379
        %v390 = vadd.f32 %v359, %v380
        %v391 = vadd.f32 %v361, %v381
        %v392 = vadd.f32 %v363, %v382
        %v393 = vadd.f32 %v365, %v383
        %v394 = vadd.f32 %v367, %v384
        %395 = vst [vmem:[%s228] sm:$0xff] %v385
        %396 = vst [vmem:[%s228 + $0x10] sm:$0xff] %v386
        %397 = vst [vmem:[%s228 + $0x20] sm:$0xff] %v387
        %398 = vst [vmem:[%s228 + $0x30] sm:$0xff] %v388
        %399 = vst [vmem:[%s228 + $0x40] sm:$0xff] %v389
        %400 = vst [vmem:[%s228 + $0x50] sm:$0xff] %v390
        %401 = vst [vmem:[%s228 + $0x60] sm:$0xff] %v391
        %402 = vst [vmem:[%s228 + $0x70] sm:$0xff] %v392
        %403 = vst [vmem:[%s228 + $0x80] sm:$0xff] %v393
        %404 = vst [vmem:[%s228 + $0x90] sm:$0xff] %v394
        %405 = vst [vmem:[%s228 + $0x8] sm:$0xff] %v350
        %406 = vst [vmem:[%s228 + $0x18] sm:$0xff] %v352
        %407 = vst [vmem:[%s228 + $0x28] sm:$0xff] %v354
        %408 = vst [vmem:[%s228 + $0x38] sm:$0xff] %v356
        %409 = vst [vmem:[%s228 + $0x48] sm:$0xff] %v358
        %410 = vst [vmem:[%s228 + $0x58] sm:$0xff] %v360
        %411 = vst [vmem:[%s228 + $0x68] sm:$0xff] %v362
        %412 = vst [vmem:[%s228 + $0x78] sm:$0xff] %v364
        %413 = vst [vmem:[%s228 + $0x88] sm:$0xff] %v366
        %414 = vst [vmem:[%s228 + $0x98] sm:$0xff] %v368
        %s415 = sld [smem:[#allocation6 + $0x80]]
        %v416 = vstv %s415
        %v417 = vmul.f32 %v416, %v233
        %v418 = vmul.f32 %v416, %v234
        %v419 = vmul.f32 %v416, %v235
        %v420 = vmul.f32 %v416, %v236
        %v421 = vmul.f32 %v416, %v237
        %v422 = vmul.f32 %v416, %v238
        %v423 = vmul.f32 %v416, %v239
        %v424 = vmul.f32 %v416, %v240
        %v425 = vmul.f32 %v416, %v241
        %v426 = vmul.f32 %v416, %v242
        %v427 = vmul.f32 %v416, %v243
        %v428 = vmul.f32 %v416, %v244
        %v429 = vmul.f32 %v416, %v245
        %v430 = vmul.f32 %v416, %v246
        %v431 = vmul.f32 %v416, %v247
        %v432 = vmul.f32 %v416, %v248
        %v433 = vmul.f32 %v416, %v249
        %v434 = vmul.f32 %v416, %v250
        %v435 = vmul.f32 %v416, %v251
        %v436 = vmul.f32 %v416, %v252
        %s437 = sld [smem:[#allocation6 + $0x81]]
        %v438 = vstv %s437
        %v439 = vmul.f32 %v438, %v254
        %v440 = vmul.f32 %v438, %v255
        %v441 = vmul.f32 %v438, %v256
        %v442 = vmul.f32 %v438, %v257
        %v443 = vmul.f32 %v438, %v258
        %v444 = vmul.f32 %v438, %v259
        %v445 = vmul.f32 %v438, %v260
        %v446 = vmul.f32 %v438, %v261
        %v447 = vmul.f32 %v438, %v262
        %v448 = vmul.f32 %v438, %v263
        %v449 = vmul.f32 %v438, %v264
        %v450 = vmul.f32 %v438, %v265
        %v451 = vmul.f32 %v438, %v266
        %v452 = vmul.f32 %v438, %v267
        %v453 = vmul.f32 %v438, %v268
        %v454 = vmul.f32 %v438, %v269
        %v455 = vmul.f32 %v438, %v270
        %v456 = vmul.f32 %v438, %v271
        %v457 = vmul.f32 %v438, %v272
        %v458 = vmul.f32 %v438, %v273
        %v459 = vadd.f32 %v417, %v439
        %v460 = vadd.f32 %v418, %v440
        %v461 = vadd.f32 %v419, %v441
        %v462 = vadd.f32 %v420, %v442
        %v463 = vadd.f32 %v421, %v443
        %v464 = vadd.f32 %v422, %v444
        %v465 = vadd.f32 %v423, %v445
        %v466 = vadd.f32 %v424, %v446
        %v467 = vadd.f32 %v425, %v447
        %v468 = vadd.f32 %v426, %v448
        %v469 = vadd.f32 %v427, %v449
        %v470 = vadd.f32 %v428, %v450
        %v471 = vadd.f32 %v429, %v451
        %v472 = vadd.f32 %v430, %v452
        %v473 = vadd.f32 %v431, %v453
        %v474 = vadd.f32 %v432, %v454
        %v475 = vadd.f32 %v433, %v455
        %v476 = vadd.f32 %v434, %v456
        %v477 = vadd.f32 %v435, %v457
        %v478 = vadd.f32 %v436, %v458
        %v479 = vmul.f32 %v459, %v342
        %v480 = vmul.f32 %v460, %v346
        %v481 = vmul.f32 %v461, %v342
        %v482 = vmul.f32 %v462, %v346
        %v483 = vmul.f32 %v463, %v342
        %v484 = vmul.f32 %v464, %v346
        %v485 = vmul.f32 %v465, %v342
        %v486 = vmul.f32 %v466, %v346
        %v487 = vmul.f32 %v467, %v342
        %v488 = vmul.f32 %v468, %v346
        %v489 = vmul.f32 %v469, %v342
        %v490 = vmul.f32 %v470, %v346
        %v491 = vmul.f32 %v471, %v342
        %v492 = vmul.f32 %v472, %v346
        %v493 = vmul.f32 %v473, %v342
        %v494 = vmul.f32 %v474, %v346
        %v495 = vmul.f32 %v475, %v342
        %v496 = vmul.f32 %v476, %v346
        %v497 = vmul.f32 %v477, %v342
        %v498 = vmul.f32 %v478, %v346
        %v499 = vmul.f32 %v459, %v373
        %v500 = vmul.f32 %v461, %v373
        %v501 = vmul.f32 %v463, %v373
        %v502 = vmul.f32 %v465, %v373
        %v503 = vmul.f32 %v467, %v373
        %v504 = vmul.f32 %v469, %v373
        %v505 = vmul.f32 %v471, %v373
        %v506 = vmul.f32 %v473, %v373
        %v507 = vmul.f32 %v475, %v373
        %v508 = vmul.f32 %v477, %v373
        %v509 = vadd.f32 %v479, %v499
        %v510 = vadd.f32 %v481, %v500
        %v511 = vadd.f32 %v483, %v501
        %v512 = vadd.f32 %v485, %v502
        %v513 = vadd.f32 %v487, %v503
        %v514 = vadd.f32 %v489, %v504
        %v515 = vadd.f32 %v491, %v505
        %v516 = vadd.f32 %v493, %v506
        %v517 = vadd.f32 %v495, %v507
        %v518 = vadd.f32 %v497, %v508
        %s519 = scalar_lea.vmem %s228, 160 [#allocation7]
        %520 = vst [vmem:[%s519] sm:$0xff] %v509
        %521 = vst [vmem:[%s519 + $0x10] sm:$0xff] %v510
        %522 = vst [vmem:[%s519 + $0x20] sm:$0xff] %v511
        %523 = vst [vmem:[%s519 + $0x30] sm:$0xff] %v512
        %524 = vst [vmem:[%s519 + $0x40] sm:$0xff] %v513
        %525 = vst [vmem:[%s519 + $0x50] sm:$0xff] %v514
        %526 = vst [vmem:[%s519 + $0x60] sm:$0xff] %v515
        %527 = vst [vmem:[%s519 + $0x70] sm:$0xff] %v516
        %528 = vst [vmem:[%s519 + $0x80] sm:$0xff] %v517
        %529 = vst [vmem:[%s519 + $0x90] sm:$0xff] %v518
        %530 = vst [vmem:[%s519 + $0x8] sm:$0xff] %v480
        %531 = vst [vmem:[%s519 + $0x18] sm:$0xff] %v482
        %532 = vst [vmem:[%s519 + $0x28] sm:$0xff] %v484
        %533 = vst [vmem:[%s519 + $0x38] sm:$0xff] %v486
        %534 = vst [vmem:[%s519 + $0x48] sm:$0xff] %v488
        %535 = vst [vmem:[%s519 + $0x58] sm:$0xff] %v490
        %536 = vst [vmem:[%s519 + $0x68] sm:$0xff] %v492
        %537 = vst [vmem:[%s519 + $0x78] sm:$0xff] %v494
        %538 = vst [vmem:[%s519 + $0x88] sm:$0xff] %v496
        %539 = vst [vmem:[%s519 + $0x98] sm:$0xff] %v498
        %s540 = sand.u32 %s97, 1
        %s541 = scalar_lea.sflag [#allocation4], %s540
        %s542 = sand.u32 %s97, 1
        %s543 = smul.addr %s542, 320
        %s544 = scalar_lea.vmem [#allocation7], %s543
        // Predicated region
        $region41: #{tpu_custom_call.1} parent=31 // pred_check
          %p545 = pneg %p107
        $region42: #{tpu_custom_call.1} parent=31 // pred_check_branch
          %547 = sbr.rel (%p545) target = $region44
        $region43: #{tpu_custom_call.1} parent=31 // pred_region
          #allocation11 [shape = 'u32[6]{0}', space=smem, size = 0x18, scoped, tag = 'DMA stride descriptor']
          %s548 = smul.u32 10, %s21
          %s550 = ssub.s32 5120, 5120
          %551 = vsyncadd %s541, %s550
          %s552 = smul.addr %s548, 2
          %s553 = smul.addr %s552, 128
          %s554 = scalar_lea.hbm %s3, %s553
          %s556 = sshll.u32 1, 14
          %s557 = sxor.u32 4294967295, %s556
          %s560 = sshll.u32 7, 18
          %s561 = sxor.u32 4294967295, %s560
          %s562 = sand.u32 0, %s561
          %s564 = sor.u32 %s562, 0
          %s566 = sshll.u32 3, 24
          %s567 = sxor.u32 4294967295, %s566
          %s568 = sand.u32 %s564, %s567
          %s570 = sor.u32 %s568, 0
          %s571 = sshll.u32 %s544, 4
          %s572 = int_to_ptr.vmem [resolvable:$true] %s571
          %578 = sst [smem:[#allocation11]] 2560
          %s579 = scalar_lea.smem [#allocation11], 1
          %580 = sst [smem:[%s579]] 5120
          %s581 = scalar_lea.smem [#allocation11], 2
          %582 = sst [smem:[%s581]] 10
          %s583 = scalar_lea.smem [#allocation11], 3
          %584 = sst [smem:[%s583]] 256
          %s585 = scalar_lea.smem [#allocation11], 4
          %586 = sst [smem:[%s585]] 256
          %s587 = scalar_lea.smem [#allocation11], 5
          %588 = sst [smem:[%s587]] 16
          %590 = dma.general %s572, 5120, %s554, %s541, [#allocation10], [#allocation11], %s570, 0
        $region44: #{tpu_custom_call.1} parent=31 // pred_fallthru
          _
      $region32: #{tpu_custom_call.1} parent=5 // pred_fallthru
        _
      %p591 = scmp.le.s32.totalorder 2, %s16
      // Predicated region
      $region45: #{tpu_custom_call.1} parent=5 // pred_check
        %p592 = pneg %p591
      $region46: #{tpu_custom_call.1} parent=5 // pred_check_branch
        %594 = sbr.rel (%p592) target = $region48
      $region47: #{tpu_custom_call.1} parent=5 // pred_region
        %s595 = ssub.s32 %s16, 2
        // Predicated region
        $region49: #{tpu_custom_call.1} parent=47 // pred_check
          %p596 = pneg %p113
        $region50: #{tpu_custom_call.1} parent=47 // pred_check_branch
          %598 = sbr.rel (%p596) target = $region52
        $region51: #{tpu_custom_call.1} parent=47 // pred_region
          %s599 = sand.u32 %s98, 1
          %s600 = scalar_lea.sflag [#allocation4], %s599
          %s601 = sand.u32 %s98, 1
          %s602 = smul.addr %s601, 320
          %s603 = scalar_lea.vmem [#allocation7], %s602
          %604 = dma.done %s600, 5120
        $region52: #{tpu_custom_call.1} parent=47 // pred_fallthru
          _
      $region48: #{tpu_custom_call.1} parent=5 // pred_fallthru
        _
    $region6: #{tpu_custom_call.1} parent=1 // loop_footer
      %s20 = sadd.s32 1, %s16
    $region7: #{tpu_custom_call.1} parent=1 // loop_footer_branch
      %15 = sbr.rel target = $region3
    $region8: #{tpu_custom_call.1} parent=1 // loop_exit
      _
    %605 = vsyncpa [#allocation3], 1
    %s606 = scalar_lea.sflag [#allocation3], 1
    %607 = vsyncpa %s606, 1
    %608 = vsyncpa [#allocation4], 1
    %s609 = scalar_lea.sflag [#allocation4], 1
    %610 = vsyncpa %s609, 1
    %611 = vsyncpa [#allocation5], 1
    %s612 = scalar_lea.sflag [#allocation5], 1
    %613 = vsyncpa %s612, 1

</llo_original>
